<compile_context>
chip_gen: v6e
topology: v6e:2x2x1
jax: 0.10.0
libtpu: 0.0.40
codegen_flags: <defaults>
</compile_context>

<pallas_src>
import jax
import jax.numpy as jnp
from jax.experimental import pallas as pl
from jax.experimental.pallas import tpu as pltpu


def _round_up(x: int, m: int) -> int:
    return ((x + m - 1) // m) * m


def _cdiv(a: int, b: int) -> int:
    return (a + b - 1) // b


# Sublane packing per element size (fp8 -> 32, bf16 -> 16, f32 -> 8).
_SUBLANE = {1: 32, 2: 16, 4: 8}


# --------------------------------------------------------------------------
# Kernels: y[i, j] = sum_k x[i, k] * w[k, j]  (+ bias[j])
#   x_ref: (tm, tk), w_ref: (tk, tn) [pre-transposed weight], o_ref: (tm, tn)
# --------------------------------------------------------------------------
def _mm_kernel(x_ref, w_ref, o_ref, acc_ref):
    """Narrow output dtype: f32 VMEM scratch accumulator."""
    k = pl.program_id(2)

    @pl.when(k == 0)
    def _():
        acc_ref[...] = jnp.zeros_like(acc_ref)

    acc_ref[...] += jnp.dot(
        x_ref[...], w_ref[...], preferred_element_type=jnp.float32
    )

    @pl.when(k == pl.num_programs(2) - 1)
    def _():
        o_ref[...] = acc_ref[...].astype(o_ref.dtype)


def _mm_bias_kernel(x_ref, w_ref, b_ref, o_ref, acc_ref):
    k = pl.program_id(2)

    @pl.when(k == 0)
    def _():
        acc_ref[...] = jnp.zeros_like(acc_ref)

    acc_ref[...] += jnp.dot(
        x_ref[...], w_ref[...], preferred_element_type=jnp.float32
    )

    @pl.when(k == pl.num_programs(2) - 1)
    def _():
        # b_ref is (1, tn): broadcasts over the tm rows of the accumulator.
        o_ref[...] = (acc_ref[...] + b_ref[...].astype(jnp.float32)).astype(
            o_ref.dtype
        )


def _mm_kernel_f32out(x_ref, w_ref, o_ref):
    """f32 output: accumulate directly into o_ref (resident across k axis)."""
    k = pl.program_id(2)

    @pl.when(k == 0)
    def _():
        o_ref[...] = jnp.zeros_like(o_ref)

    o_ref[...] += jnp.dot(
        x_ref[...], w_ref[...], preferred_element_type=jnp.float32
    )


def _mm_bias_kernel_f32out(x_ref, w_ref, b_ref, o_ref):
    k = pl.program_id(2)

    @pl.when(k == 0)
    def _():
        o_ref[...] = jnp.zeros_like(o_ref)

    o_ref[...] += jnp.dot(
        x_ref[...], w_ref[...], preferred_element_type=jnp.float32
    )

    @pl.when(k == pl.num_programs(2) - 1)
    def _():
        o_ref[...] += b_ref[...].astype(jnp.float32)


# --------------------------------------------------------------------------
# Tile selection & wrapper.
# --------------------------------------------------------------------------
def _select_nk_tiles(N: int, K: int, w_dtype):
    """tn / tk depend only on (N, K, weight dtype) so the weight can be padded
    once at init.  Main-path tiles are 256-aligned (v6e/v7x MXU is 2x256x256);
    small dims are clamped to 128-granularity to avoid wasted MXU work."""
    wb = jnp.dtype(w_dtype).itemsize
    tn = min(512, _round_up(N, 128))
    tk_cap = 2048 if wb <= 2 else 1024  # deeper K tiles for bf16 / fp8
    tk = min(tk_cap, _round_up(K, 128))
    return tn, tk


def pallas_linear_padded(x2d, w_t_pad, bias_pad, n_valid, tn_base, tk):
    """y = x2d @ w_t_pad (+ bias).  w_t_pad is pre-transposed & pre-padded
    [Kp, Np]; bias_pad is (1, Np) or None.  Returns [M, n_valid]."""
    M, K = x2d.shape
    Kp, Np = w_t_pad.shape
    out_dtype = x2d.dtype

    # tm sized to minimize row padding (e.g. M=520 -> tm=264, not Mp=1024),
    # aligned to the dtype sublane so packed rows aren't masked.
    sub = _SUBLANE.get(jnp.dtype(x2d.dtype).itemsize, 8)
    m_blocks = _cdiv(M, 512)
    tm = min(512, _round_up(_cdiv(M, m_blocks), sub))
    Mp = _round_up(M, tm)

    # Decode-sized M with a single j block: split j so both v7x TensorCores
    # get work under the "parallel" semantics (tn must still divide Np).
    tn = tn_base
    if Mp // tm == 1 and Np // tn < 2 and Np % 256 == 0:
        tn = Np // 2

    # Only the (small) activation ever needs per-call padding.
    if Mp != M or Kp != K:
        x2d = jnp.pad(x2d, ((0, Mp - M), (0, Kp - K)))

    grid = (Mp // tm, Np // tn, Kp // tk)
    f32_out = jnp.dtype(out_dtype) == jnp.dtype(jnp.float32)

    x_spec = pl.BlockSpec((tm, tk), lambda i, j, k: (i, k))
    # TODO(synk): for HBM-bound small-M shapes, deepen weight prefetch with
    # pipeline_mode=pl.Buffered(3) on this spec.
    w_spec = pl.BlockSpec((tk, tn), lambda i, j, k: (k, j))
    o_spec = pl.BlockSpec((tm, tn), lambda i, j, k: (i, j))

    in_specs = [x_spec, w_spec]
    args = [x2d, w_t_pad]
    if bias_pad is not None:
        in_specs.append(pl.BlockSpec((1, tn), lambda i, j, k: (0, j)))
        args.append(bias_pad)
        kernel = _mm_bias_kernel_f32out if f32_out else _mm_bias_kernel
    else:
        kernel = _mm_kernel_f32out if f32_out else _mm_kernel

    scratch = [] if f32_out else [pltpu.VMEM((tm, tn), jnp.float32)]

    # VMEM limit derived from actual tile footprint (double-buffered inputs
    # and outputs + scratch) with headroom; capped below v7x's 64 MiB per TC.
    xb = jnp.dtype(x2d.dtype).itemsize
    wb = jnp.dtype(w_t_pad.dtype).itemsize
    ob = jnp.dtype(out_dtype).itemsize
    need = 2 * tm * tk * xb + 2 * tk * tn * wb + 2 * tm * tn * ob
    if not f32_out:
        need += tm * tn * 4
    if bias_pad is not None:
        need += 2 * tn * jnp.dtype(bias_pad.dtype).itemsize
    vmem_limit = min(max(need + (8 << 20), 32 << 20), 60 << 20)

    cost = pl.CostEstimate(
        flops=2 * Mp * Np * Kp,
        transcendentals=0,
        bytes_accessed=Mp * Kp * xb + Kp * Np * wb + Mp * Np * ob,
    )

    y = pl.pallas_call(
        kernel,
        out_shape=jax.ShapeDtypeStruct((Mp, Np), out_dtype),
        grid_spec=pltpu.PrefetchScalarGridSpec(
            num_scalar_prefetch=0,
            grid=grid,
            in_specs=in_specs,
            out_specs=o_spec,
            scratch_shapes=scratch,
        ),
        compiler_params=pltpu.CompilerParams(
            dimension_semantics=("parallel", "parallel", "arbitrary"),
            vmem_limit_bytes=vmem_limit,
        ),
        cost_estimate=cost,
    )(*args)

    if Mp != M or Np != n_valid:
        y = y[:M, :n_valid]
    return y


class ColumnParallelLinear:
    """JAX/Pallas port of vLLM's ColumnParallelLinear (tp_size = 1)."""

    def __init__(
        self,
        input_size: int,
        output_size: int,
        bias: bool = True,
        gather_output: bool = False,
        skip_bias_add: bool = False,
        params_dtype=jnp.bfloat16,  # bf16-native MXU; tests may override to f32
        *,
        key=None,
    ):
        self.input_size = input_size
        self.output_size = output_size
        self.gather_output = gather_output            # tp_size == 1 -> no-op
        self.skip_bias_add = skip_bias_add
        self.params_dtype = params_dtype
        self.output_size_per_partition = output_size  # divide(output_size, 1)

        # Tile bases depend only on (N, K, dtype): pad weight/bias ONCE here.
        self._tn, self._tk = _select_nk_tiles(output_size, input_size, params_dtype)
        self._Np = _round_up(output_size, self._tn)
        self._Kp = _round_up(input_size, self._tk)

        if key is None:
            key = jax.random.PRNGKey(0)
        wkey, bkey = jax.random.split(key)

        # Deterministic synthetic parameters (UnquantizedLinearMethod layout:
        # weight[output, input]); only the padded [Kp, Np] kernel layout is
        # kept resident — the PyTorch view is derived lazily via `weight`.
        w = (
            jax.random.normal(wkey, (output_size, input_size), jnp.float32) * 0.02
        ).astype(params_dtype)
        w_t = w.T  # [K, N]
        if self._Kp != input_size or self._Np != output_size:
            w_t = jnp.pad(
                w_t, ((0, self._Kp - input_size), (0, self._Np - output_size))
            )
        self.weight_t = w_t  # [Kp, Np] — the only persistent weight copy
        # TODO(synk): on v7x, quantize weight_t to fp8 with per-output-channel
        # scales and fold the dequant into the last-k epilogue.

        if bias:
            self.bias = (
                jax.random.normal(bkey, (output_size,), jnp.float32) * 0.02
            ).astype(params_dtype)
            b2d = self.bias.reshape(1, output_size)
            if self._Np != output_size:
                b2d = jnp.pad(b2d, ((0, 0), (0, self._Np - output_size)))
            self._bias_padded = b2d  # (1, Np), lane-dense
        else:
            self.bias = None
            self._bias_padded = None

    @property
    def weight(self):
        """PyTorch-layout [output_size, input_size] view (derived lazily)."""
        return self.weight_t[: self.input_size, : self.output_size_per_partition].T

    def forward(self, x):
        *lead, K = x.shape
        assert K == self.input_size
        M = 1
        for d in lead:
            M *= d
        x2d = x.reshape(M, K)

        N = self.output_size_per_partition
        add_bias = (self.bias is not None) and (not self.skip_bias_add)
        fused_bias = self._bias_padded if add_bias else None

        y2d = pallas_linear_padded(
            x2d, self.weight_t, fused_bias, N, self._tn, self._tk
        )
        output = y2d.reshape(*lead, N)
        # TODO(synk): gather_output all-gather is a no-op at tp_size=1; a real
        # multi-chip version would use pltpu.make_async_remote_copy.
        output_bias = self.bias if self.skip_bias_add else None
        return output, output_bias

    __call__ = forward


if __name__ == "__main__":
    key = jax.random.PRNGKey(0)
    k_x, k_p, k_x2, k_p2 = jax.random.split(key, 4)

    # --- Test 1: aligned shapes, fused bias ---------------------------------
    batch, seq, input_size, output_size = 2, 8, 256, 128
    x = jax.random.normal(k_x, (batch, seq, input_size), jnp.float32)

    layer = ColumnParallelLinear(
        input_size, output_size, bias=True, skip_bias_add=False,
        params_dtype=jnp.float32, key=k_p,
    )
    out, out_bias = layer(x)
    out = jax.block_until_ready(out)

    ref = x.reshape(-1, input_size) @ layer.weight.T + layer.bias
    ref = ref.reshape(batch, seq, output_size)
    assert out.shape == (batch, seq, output_size)
    assert out_bias is None
    assert jnp.allclose(out, ref, atol=1e-3, rtol=1e-3)

    # --- Test 2: skip_bias_add (no-bias kernel path) ------------------------
    layer_sb = ColumnParallelLinear(
        input_size, output_size, bias=True, skip_bias_add=True,
        params_dtype=jnp.float32, key=k_p,
    )
    out_sb, out_sb_bias = layer_sb(x)
    out_sb = jax.block_until_ready(out_sb)
    ref_sb = (x.reshape(-1, input_size) @ layer_sb.weight.T).reshape(
        batch, seq, output_size
    )
    assert jnp.allclose(out_sb, ref_sb, atol=1e-3, rtol=1e-3)
    assert out_sb_bias is not None
    assert jnp.allclose(out_sb_bias, layer_sb.bias)

    # --- Test 3: ragged / non-128-multiple shapes (exercise padding path) ---
    b2, s2, in2, out2 = 1, 5, 96, 80
    x2 = jax.random.normal(k_x2, (b2, s2, in2), jnp.float32)
    layer2 = ColumnParallelLinear(
        in2, out2, bias=True, skip_bias_add=False,
        params_dtype=jnp.float32, key=k_p2,
    )
    y2, _ = layer2(x2)
    y2 = jax.block_until_ready(y2)
    ref2 = (x2.reshape(-1, in2) @ layer2.weight.T + layer2.bias).reshape(
        b2, s2, out2
    )
    assert y2.shape == (b2, s2, out2)
    assert jnp.allclose(y2, ref2, atol=1e-3, rtol=1e-3)

    print("KERNEL_OK")
</pallas_src>

<mosaic_0001>
module attributes {stable_mosaic.version = 11 : i64} {
  func.func @_mm_bias_kernel_f32out(%arg0: i32, %arg1: i32, %arg2: i32, %arg3: memref<16x256xf32, #tpu.memory_space<vmem>>, %arg4: memref<256x128xf32, #tpu.memory_space<vmem>>, %arg5: memref<1x128xf32, #tpu.memory_space<vmem>>, %arg6: memref<16x128xf32, #tpu.memory_space<vmem>>) attributes {dimension_semantics = [#tpu.dimension_semantics<parallel>, #tpu.dimension_semantics<parallel>, #tpu.dimension_semantics<arbitrary>], iteration_bounds = array<i64: 1, 1, 1>, scalar_prefetch = 0 : i64, scratch_operands = 0 : i64, tpu.core_type = #tpu.core_type<tc>, window_params = [{transform_indices = @transform_0, window_bounds = array<i64: 16, 256>}, {transform_indices = @transform_1, window_bounds = array<i64: 256, 128>}, {transform_indices = @transform_2, window_bounds = array<i64: 1, 128>}, {transform_indices = @transform_3, window_bounds = array<i64: 16, 128>}]} {
    %c0_i32 = arith.constant 0 : i32
    %0 = arith.cmpi eq, %arg2, %c0_i32 : i32
    %1 = arith.extui %0 : i1 to i32
    %c0_i32_0 = arith.constant 0 : i32
    %2 = arith.cmpi ne, %1, %c0_i32_0 : i32
    scf.if %2 {
      %cst_10 = arith.constant 0.000000e+00 : f32
      %12 = vector.broadcast %cst_10 : f32 to vector<16x128xf32>
      %c0_11 = arith.constant 0 : index
      %c0_12 = arith.constant 0 : index
      %13 = vector.load %arg6[%c0_11, %c0_12] : memref<16x128xf32, #tpu.memory_space<vmem>>, vector<16x128xf32>
      tpu.vector_store %arg6[%c0_11, %c0_12], %12 {strides = array<i32>} : memref<16x128xf32, #tpu.memory_space<vmem>>, vector<16x128xf32>,
    } else {
    }
    %c0 = arith.constant 0 : index
    %c0_1 = arith.constant 0 : index
    %3 = vector.load %arg6[%c0, %c0_1] : memref<16x128xf32, #tpu.memory_space<vmem>>, vector<16x128xf32>
    %c0_2 = arith.constant 0 : index
    %c0_3 = arith.constant 0 : index
    %4 = vector.load %arg3[%c0_2, %c0_3] : memref<16x256xf32, #tpu.memory_space<vmem>>, vector<16x256xf32>
    %c0_4 = arith.constant 0 : index
    %c0_5 = arith.constant 0 : index
    %5 = vector.load %arg4[%c0_4, %c0_5] : memref<256x128xf32, #tpu.memory_space<vmem>>, vector<256x128xf32>
    %cst = arith.constant dense<0.000000e+00> : vector<16x128xf32>
    %6 = tpu.matmul %4, %5, %cst {dimension_numbers = #tpu.dot_dimension_numbers<[1], [0], [0], [1], [0, 0, 1, 1], [], []>} : vector<16x256xf32>, vector<256x128xf32>, vector<16x128xf32> -> vector<16x128xf32>
    %7 = arith.addf %3, %6 : vector<16x128xf32>
    %c0_6 = arith.constant 0 : index
    %c0_7 = arith.constant 0 : index
    %8 = vector.load %arg6[%c0_6, %c0_7] : memref<16x128xf32, #tpu.memory_space<vmem>>, vector<16x128xf32>
    tpu.vector_store %arg6[%c0_6, %c0_7], %7 {strides = array<i32>} : memref<16x128xf32, #tpu.memory_space<vmem>>, vector<16x128xf32>,
    %c0_i32_8 = arith.constant 0 : i32
    %9 = arith.cmpi eq, %arg2, %c0_i32_8 : i32
    %10 = arith.extui %9 : i1 to i32
    %c0_i32_9 = arith.constant 0 : i32
    %11 = arith.cmpi ne, %10, %c0_i32_9 : i32
    scf.if %11 {
      %c0_10 = arith.constant 0 : index
      %c0_11 = arith.constant 0 : index
      %12 = vector.load %arg6[%c0_10, %c0_11] : memref<16x128xf32, #tpu.memory_space<vmem>>, vector<16x128xf32>
      %c0_12 = arith.constant 0 : index
      %c0_13 = arith.constant 0 : index
      %13 = vector.load %arg5[%c0_12, %c0_13] : memref<1x128xf32, #tpu.memory_space<vmem>>, vector<1x128xf32>
      %14 = vector.broadcast %13 : vector<1x128xf32> to vector<16x128xf32>
      %15 = arith.addf %12, %14 : vector<16x128xf32>
      %c0_14 = arith.constant 0 : index
      %c0_15 = arith.constant 0 : index
      %16 = vector.load %arg6[%c0_14, %c0_15] : memref<16x128xf32, #tpu.memory_space<vmem>>, vector<16x128xf32>
      tpu.vector_store %arg6[%c0_14, %c0_15], %15 {strides = array<i32>} : memref<16x128xf32, #tpu.memory_space<vmem>>, vector<16x128xf32>,
    } else {
    }
    return
  }
  func.func @transform_0(%arg0: i32, %arg1: i32, %arg2: i32) -> (i32, i32) {
    %c0_i32 = arith.constant 0 : i32
    return %arg0, %arg2 : i32, i32
  }
  func.func @transform_1(%arg0: i32, %arg1: i32, %arg2: i32) -> (i32, i32) {
    %c0_i32 = arith.constant 0 : i32
    return %arg2, %arg1 : i32, i32
  }
  func.func @transform_2(%arg0: i32, %arg1: i32, %arg2: i32) -> (i32, i32) {
    %c0_i32 = arith.constant 0 : i32
    %c0_i32_0 = arith.constant 0 : i32
    return %c0_i32, %arg1 : i32, i32
  }
  func.func @transform_3(%arg0: i32, %arg1: i32, %arg2: i32) -> (i32, i32) {
    %c0_i32 = arith.constant 0 : i32
    return %arg0, %arg1 : i32, i32
  }
}

</mosaic_0001>

<llo_original>
// kernel: tpu_custom_call.1
$region0: #{tpu_custom_call.1}
  #allocation0 [shape = 'u32[]', space=smem, size = 0x4, offset = 0x4, fixed_abs, tag = 'smem constant byte address 0x4 - core index']
  #allocation1 [shape = 'u32[144,128]{1,0:T(1,128)}', space=vmem, size = 0x12000, scoped, tag = 'internal scratch']
  %s0 = inlined_call_operand.hbm [shape: f32[16,256], index: 0, kind: input, shape index: {}]
  %s1 = inlined_call_operand.hbm [shape: f32[256,128], index: 1, kind: input, shape index: {}]
  %s2 = inlined_call_operand.vmem [shape: f32[1,128], index: 2, kind: input, shape index: {}]
  %s3 = inlined_call_operand.hbm [shape: f32[16,128], index: 3, kind: output, shape index: {}]
  %s4 = sld [smem:[#allocation0]]
  $region38: #{tpu_custom_call.1} parent=0
    _
  %s6 = ssub.s32 1, %s4
  %s7 = scalar_select 0, %s6, %s4
  $region1: #{tpu_custom_call.1} parent=0
    #allocation2 [shape = 'u8[16384]{0}', space=vmem, size = 0x4000, scoped, tag = 'input window, operand 0, single buffered']
    #allocation3 [shape = 's32[1]{0}', space=sflag, size = 0x4, scoped, tag = 'scoped memory for tpu_custom_call.1']
    #allocation4 [shape = 's32[1]{0}', space=sflag, size = 0x4, scoped, tag = 'scoped memory for tpu_custom_call.1']
    #allocation5 [shape = 'u8[131072]{0}', space=vmem, size = 0x20000, scoped, tag = 'input window, operand 1, single buffered']
    #allocation6 [shape = 's32[1]{0}', space=sflag, size = 0x4, scoped, tag = 'scoped memory for tpu_custom_call.1']
    #allocation7 [shape = 'u8[8192]{0}', space=vmem, size = 0x2000, scoped, tag = 'output window, operand 0, single buffered']
    %8 = vsyncpa [#allocation3], 0
    %9 = vsyncpa [#allocation6], 0
    %10 = vsyncpa [#allocation4], 0
    // Predicated region
    $region2: #{tpu_custom_call.1} parent=1 // pred_check
      _
    $region3: #{tpu_custom_call.1} parent=1 // pred_check_branch
      %12 = sbr.rel (0) target = $region5
    $region4: #{tpu_custom_call.1} parent=1 // pred_region
      %s14 = ssub.s32 512, 512
      %15 = vsyncadd [#allocation3], %s14
      %s16 = sshll.u32 [#allocation2], 4
      %s17 = int_to_ptr.vmem [resolvable:$true] %s16
      %22 = dma.hbm_to_vmem [thread:$0]  %s0, 512, %s17, [#allocation3], 256, 256, 16
    $region5: #{tpu_custom_call.1} parent=1 // pred_fallthru
      _
    // Predicated region
    $region6: #{tpu_custom_call.1} parent=1 // pred_check
      _
    $region7: #{tpu_custom_call.1} parent=1 // pred_check_branch
      %24 = sbr.rel (0) target = $region9
    $region8: #{tpu_custom_call.1} parent=1 // pred_region
      %s26 = ssub.s32 4096, 4096
      %27 = vsyncadd [#allocation6], %s26
      %s28 = sshll.u32 [#allocation5], 4
      %s29 = int_to_ptr.vmem [resolvable:$true] %s28
      %34 = dma.hbm_to_vmem [thread:$0]  %s1, 4096, %s29, [#allocation6], 128, 128, 8
    $region9: #{tpu_custom_call.1} parent=1 // pred_fallthru
      _
    // Predicated region
    $region10: #{tpu_custom_call.1} parent=1 // pred_check
      _
    $region11: #{tpu_custom_call.1} parent=1 // pred_check_branch
      %36 = sbr.rel (0) target = $region13
    $region12: #{tpu_custom_call.1} parent=1 // pred_region
      _
    $region13: #{tpu_custom_call.1} parent=1 // pred_fallthru
      _
    // Predicated region
    $region14: #{tpu_custom_call.1} parent=1 // pred_check
      _
    $region15: #{tpu_custom_call.1} parent=1 // pred_check_branch
      %38 = sbr.rel (0) target = $region17
    $region16: #{tpu_custom_call.1} parent=1 // pred_region
      %39 = dma.done [#allocation3], 512
    $region17: #{tpu_custom_call.1} parent=1 // pred_fallthru
      _
    // Predicated region
    $region18: #{tpu_custom_call.1} parent=1 // pred_check
      _
    $region19: #{tpu_custom_call.1} parent=1 // pred_check_branch
      %41 = sbr.rel (0) target = $region21
    $region20: #{tpu_custom_call.1} parent=1 // pred_region
      %42 = dma.done [#allocation6], 4096
    $region21: #{tpu_custom_call.1} parent=1 // pred_fallthru
      _
    %p43 = scmp.eq.s32.totalorder 0, 0
    // Predicated region
    $region22: #{tpu_custom_call.1} parent=1 // pred_check
      %p44 = pneg %p43
    $region23: #{tpu_custom_call.1} parent=1 // pred_check_branch
      %46 = sbr.rel (%p44) target = $region25
    $region24: #{tpu_custom_call.1} parent=1 // pred_region
      %47 = vst [vmem:[#allocation7] sm:$0xff] 0.0
      %48 = vst [vmem:[#allocation7 + $0x8] sm:$0xff] 0.0
    $region25: #{tpu_custom_call.1} parent=1 // pred_fallthru
      _
    %v49 = vld [vmem:[#allocation7] sm:$0xff]
    %v50 = vld [vmem:[#allocation7 + $0x8] sm:$0xff]
    %v51 = vld [vmem:[#allocation2] sm:$0xff]
    %v52 = vld [vmem:[#allocation2 + $0x8] sm:$0xff]
    %v53 = vld [vmem:[#allocation2 + $0x10] sm:$0xff]
    %v54 = vld [vmem:[#allocation2 + $0x18] sm:$0xff]
    %v55 = vld [vmem:[#allocation5] sm:$0xff]
    %v56 = vld [vmem:[#allocation5 + $0x8] sm:$0xff]
    %v57 = vld [vmem:[#allocation5 + $0x10] sm:$0xff]
    %v58 = vld [vmem:[#allocation5 + $0x18] sm:$0xff]
    %v59 = vld [vmem:[#allocation5 + $0x20] sm:$0xff]
    %v60 = vld [vmem:[#allocation5 + $0x28] sm:$0xff]
    %v61 = vld [vmem:[#allocation5 + $0x30] sm:$0xff]
    %v62 = vld [vmem:[#allocation5 + $0x38] sm:$0xff]
    %v63 = vld [vmem:[#allocation5 + $0x40] sm:$0xff]
    %v64 = vld [vmem:[#allocation5 + $0x48] sm:$0xff]
    %v65 = vld [vmem:[#allocation5 + $0x50] sm:$0xff]
    %v66 = vld [vmem:[#allocation5 + $0x58] sm:$0xff]
    %v67 = vld [vmem:[#allocation5 + $0x60] sm:$0xff]
    %v68 = vld [vmem:[#allocation5 + $0x68] sm:$0xff]
    %v69 = vld [vmem:[#allocation5 + $0x70] sm:$0xff]
    %v70 = vld [vmem:[#allocation5 + $0x78] sm:$0xff]
    %v71 = vld [vmem:[#allocation5 + $0x80] sm:$0xff]
    %v72 = vld [vmem:[#allocation5 + $0x88] sm:$0xff]
    %v73 = vld [vmem:[#allocation5 + $0x90] sm:$0xff]
    %v74 = vld [vmem:[#allocation5 + $0x98] sm:$0xff]
    %v75 = vld [vmem:[#allocation5 + $0xa0] sm:$0xff]
    %v76 = vld [vmem:[#allocation5 + $0xa8] sm:$0xff]
    %v77 = vld [vmem:[#allocation5 + $0xb0] sm:$0xff]
    %v78 = vld [vmem:[#allocation5 + $0xb8] sm:$0xff]
    %v79 = vld [vmem:[#allocation5 + $0xc0] sm:$0xff]
    %v80 = vld [vmem:[#allocation5 + $0xc8] sm:$0xff]
    %v81 = vld [vmem:[#allocation5 + $0xd0] sm:$0xff]
    %v82 = vld [vmem:[#allocation5 + $0xd8] sm:$0xff]
    %v83 = vld [vmem:[#allocation5 + $0xe0] sm:$0xff]
    %v84 = vld [vmem:[#allocation5 + $0xe8] sm:$0xff]
    %v85 = vld [vmem:[#allocation5 + $0xf0] sm:$0xff]
    %v86 = vld [vmem:[#allocation5 + $0xf8] sm:$0xff]
    %87 = vmatprep.subr.mxu0 0.0
    %88 = vmatpush1.msra.mxu0 %v70
    %89 = vmatprep.subr.mxu0 0.0
    %90 = vmatpush1.msra.mxu0 %v69
    %91 = vmatprep.subr.mxu0 0.0
    %92 = vmatpush1.msra.mxu0 %v68
    %93 = vmatprep.subr.mxu0 0.0
    %94 = vmatpush1.msra.mxu0 %v67
    %95 = vmatprep.subr.mxu0 0.0
    %96 = vmatpush1.msra.mxu0 %v66
    %97 = vmatprep.subr.mxu0 0.0
    %98 = vmatpush1.msra.mxu0 %v65
    %99 = vmatprep.subr.mxu0 0.0
    %100 = vmatpush1.msra.mxu0 %v64
    %101 = vmatprep.subr.mxu0 0.0
    %102 = vmatpush1.msra.mxu0 %v63
    %103 = vmatprep.subr.mxu0 0.0
    %104 = vmatpush1.msra.mxu0 %v62
    %105 = vmatprep.subr.mxu0 0.0
    %106 = vmatpush1.msra.mxu0 %v61
    %107 = vmatprep.subr.mxu0 0.0
    %108 = vmatpush1.msra.mxu0 %v60
    %109 = vmatprep.subr.mxu0 0.0
    %110 = vmatpush1.msra.mxu0 %v59
    %111 = vmatprep.subr.mxu0 0.0
    %112 = vmatpush1.msra.mxu0 %v58
    %113 = vmatprep.subr.mxu0 0.0
    %114 = vmatpush1.msra.mxu0 %v57
    %115 = vmatprep.subr.mxu0 0.0
    %116 = vmatpush1.msra.mxu0 %v56
    %117 = vmatprep.subr.mxu0 0.0
    %118 = vmatpush1.msra.mxu0 %v55
    %119 = vmatprep.subr.mxu0 0.0
    %120 = vmatpush2.msra.mxu0 %v86
    %121 = vmatprep.subr.mxu0 0.0
    %122 = vmatpush2.msra.mxu0 %v85
    %123 = vmatprep.subr.mxu0 0.0
    %124 = vmatpush2.msra.mxu0 %v84
    %125 = vmatprep.subr.mxu0 0.0
    %126 = vmatpush2.msra.mxu0 %v83
    %127 = vmatprep.subr.mxu0 0.0
    %128 = vmatpush2.msra.mxu0 %v82
    %129 = vmatprep.subr.mxu0 0.0
    %130 = vmatpush2.msra.mxu0 %v81
    %131 = vmatprep.subr.mxu0 0.0
    %132 = vmatpush2.msra.mxu0 %v80
    %133 = vmatprep.subr.mxu0 0.0
    %134 = vmatpush2.msra.mxu0 %v79
    %135 = vmatprep.subr.mxu0 0.0
    %136 = vmatpush2.msra.mxu0 %v78
    %137 = vmatprep.subr.mxu0 0.0
    %138 = vmatpush2.msra.mxu0 %v77
    %139 = vmatprep.subr.mxu0 0.0
    %140 = vmatpush2.msra.mxu0 %v76
    %141 = vmatprep.subr.mxu0 0.0
    %142 = vmatpush2.msra.mxu0 %v75
    %143 = vmatprep.subr.mxu0 0.0
    %144 = vmatpush2.msra.mxu0 %v74
    %145 = vmatprep.subr.mxu0 0.0
    %146 = vmatpush2.msra.mxu0 %v73
    %147 = vmatprep.subr.mxu0 0.0
    %148 = vmatpush2.msra.mxu0 %v72
    %149 = vmatprep.subr.mxu0 0.0
    %150 = vmatpush2.msra.mxu0 %v71
    %151 = vmatprep.mubr.f32.mxu0 %v52
    %152 = vmatmul.mubr.f32.gmra.mxu0 %v51
    %v153 = vpop.f32.mrf.mxu0
    %v154 = vadd.f32 0.0, %v153
    %v155 = vpop.f32.mrf.mxu0
    %156 = vmatprep.mubr.f32.mxu0 %v54
    %157 = vmatmul.mubr.f32.gmra.mxu0 %v53
    %v158 = vpop.f32.mrf.mxu0
    %v159 = vadd.f32 0.0, %v158
    %v160 = vpop.f32.mrf.mxu0
    %161 = vdwg.mxu0
    %v162 = vadd.f32 %v49, %v154
    %v163 = vadd.f32 %v50, %v159
    %164 = vst [vmem:[#allocation7] sm:$0xff] %v162
    %165 = vst [vmem:[#allocation7 + $0x8] sm:$0xff] %v163
    // Predicated region
    $region26: #{tpu_custom_call.1} parent=1 // pred_check
      %p166 = pneg %p43
    $region27: #{tpu_custom_call.1} parent=1 // pred_check_branch
      %168 = sbr.rel (%p166) target = $region29
    $region28: #{tpu_custom_call.1} parent=1 // pred_region
      %v169 = vld [vmem:[#allocation7] sm:$0xff]
      %v170 = vld [vmem:[#allocation7 + $0x8] sm:$0xff]
      %v171 = vld [vmem:[%s2] sm:$0x1]
      %v173 = vlaneseq
      %v174 = vshrl.u32 %v173, 7
      %v175 = vsub.s32 0, %v174
      %v176 = vrot.slane %v171, %v175
      %v178 = vadd.f32 %v169, %v176
      %v179 = vadd.f32 %v170, %v176
      %180 = vst [vmem:[#allocation7] sm:$0xff] %v178
      %181 = vst [vmem:[#allocation7 + $0x8] sm:$0xff] %v179
    $region29: #{tpu_custom_call.1} parent=1 // pred_fallthru
      _
    // Predicated region
    $region30: #{tpu_custom_call.1} parent=1 // pred_check
      _
    $region31: #{tpu_custom_call.1} parent=1 // pred_check_branch
      %183 = sbr.rel (0) target = $region33
    $region32: #{tpu_custom_call.1} parent=1 // pred_region
      %s185 = ssub.s32 256, 256
      %186 = vsyncadd [#allocation4], %s185
      %s187 = sshll.u32 [#allocation7], 4
      %s188 = int_to_ptr.vmem [resolvable:$true] %s187
      %193 = dma.vmem_to_hbm [thread:$0]  %s188, 256, %s3, [#allocation4], 128, 128, 8
    $region33: #{tpu_custom_call.1} parent=1 // pred_fallthru
      _
    // Predicated region
    $region34: #{tpu_custom_call.1} parent=1 // pred_check
      _
    $region35: #{tpu_custom_call.1} parent=1 // pred_check_branch
      %195 = sbr.rel (0) target = $region37
    $region36: #{tpu_custom_call.1} parent=1 // pred_region
      %196 = dma.done [#allocation4], 256
    $region37: #{tpu_custom_call.1} parent=1 // pred_fallthru
      _
    %197 = vsyncpa [#allocation3], 1
    %198 = vsyncpa [#allocation6], 1
    %199 = vsyncpa [#allocation4], 1

</llo_original>
